<compile_context>
chip_gen: v5e
topology: v5e:2x2
jax: 0.10.0
libtpu: 0.0.40
codegen_flags: <defaults>
</compile_context>

<pallas_src>
import math

import jax
import jax.numpy as jnp
from jax.experimental import pallas as pl
from jax.experimental.pallas import tpu as pltpu

_MAX_COLS = 4096  # lane-dense slab width cap (multiple of 128)


def _hardswish_kernel(x_ref, o_ref):
    x = x_ref[...]
    # relu6(x + 3) == clamp(x + 3, 0, 6); keep compute in the input dtype.
    o_ref[...] = (x * jnp.clip(x + 3.0, 0.0, 6.0) / 6.0).astype(o_ref.dtype)


def _target_block_bytes() -> int:
    """Generation-aware block sizing: ~8 MiB on 128 MiB-VMEM chips (v5e/v6e),
    a more conservative 4 MiB otherwise (v7x has 64 MiB per TensorCore)."""
    try:
        if pltpu.get_tpu_info().vmem_capacity_bytes >= 100 * 1024 * 1024:
            return 8 * 1024 * 1024
    except Exception:
        pass
    return 4 * 1024 * 1024


def _choose_cols(total: int) -> int:
    """Widest multiple of 128 (<= _MAX_COLS) dividing `total` exactly, so the
    wrapper needs no pad/slice.  Falls back to a tiny flat-tail pad."""
    for c in range(_MAX_COLS, 0, -128):
        if total % c == 0:
            return c
    if total >= _MAX_COLS:
        return _MAX_COLS
    return 128 * (-(-total // 128))  # round tiny tensors up to one 128-wide row


def hardswish(x: jax.Array) -> jax.Array:
    """Apply HardSwish elementwise (any shape, NCHW in practice) via Pallas."""
    shape = x.shape
    dtype = x.dtype
    itemsize = jnp.dtype(dtype).itemsize
    total = math.prod(shape) if shape else 1

    # Lane-dense 2D view of the flat tensor.
    cols = _choose_cols(total)
    pad = (-total) % cols
    xf = x.reshape(-1)
    if pad:
        xf = jnp.pad(xf, (0, pad))  # only for awkward sizes; usually skipped
    rows = (total + pad) // cols
    x2d = xf.reshape(rows, cols)

    # Dtype-aware sublane granule (packed dtypes stack along sublanes).
    granule = {4: 8, 2: 16, 1: 32}.get(itemsize, 8)

    # Pick a multi-MiB row tile; cdiv grid handles a ragged last block.
    target_bytes = _target_block_bytes()
    max_tile_rows = max(granule,
                        (target_bytes // (cols * itemsize)) // granule * granule)

    if rows <= max_tile_rows:
        if rows >= 2 * granule:
            # Split into >=2 grid steps so both v7x TensorCores get work.
            half = -(-rows // 2)
            tile_rows = -(-half // granule) * granule
        else:
            tile_rows = rows  # single block == full array dims (always legal)
    else:
        tile_rows = max_tile_rows

    grid = (pl.cdiv(rows, tile_rows),)
    block_bytes = tile_rows * cols * itemsize
    # 1 in + 1 out, double-buffered, plus headroom; never above 128 MiB.
    vmem_limit = min(128 * 1024 * 1024,
                     max(16 * 1024 * 1024, 4 * block_bytes + 2 * 1024 * 1024))

    out2d = pl.pallas_call(
        _hardswish_kernel,
        out_shape=jax.ShapeDtypeStruct((rows, cols), dtype),
        grid_spec=pltpu.PrefetchScalarGridSpec(
            num_scalar_prefetch=0,
            grid=grid,
            in_specs=[pl.BlockSpec((tile_rows, cols), lambda i: (i, 0))],
            out_specs=pl.BlockSpec((tile_rows, cols), lambda i: (i, 0)),
        ),
        compiler_params=pltpu.CompilerParams(
            dimension_semantics=("parallel",),
            vmem_limit_bytes=vmem_limit,
        ),
        cost_estimate=pl.CostEstimate(
            flops=5 * total,
            transcendentals=0,
            bytes_accessed=2 * total * itemsize,
        ),
    )(x2d)

    if pad:
        return out2d.reshape(-1)[:total].reshape(shape)
    return out2d.reshape(shape)


def hardswish_ref(x):
    return x * jnp.clip(x + 3.0, 0.0, 6.0) / 6.0


if __name__ == "__main__":
    key = jax.random.PRNGKey(0)

    # NCHW, matching PyTorch conv layout conventions.
    x = jax.random.normal(key, (2, 4, 16, 16), dtype=jnp.float32) * 4.0
    y = hardswish(x)
    jax.block_until_ready(y)
    y_ref = hardswish_ref(x)
    assert y.shape == x.shape and y.dtype == x.dtype
    assert jnp.allclose(y, y_ref, atol=1e-6, rtol=1e-6), "mismatch vs reference"

    # Awkward (non-128-divisible) shape exercises the small flat-tail-pad path.
    x2 = jax.random.normal(jax.random.PRNGKey(1), (3, 5, 7, 9), dtype=jnp.float32) * 4.0
    y2 = hardswish(x2)
    jax.block_until_ready(y2)
    assert y2.shape == x2.shape and y2.dtype == x2.dtype
    assert jnp.allclose(y2, hardswish_ref(x2), atol=1e-6, rtol=1e-6), "mismatch (ragged)"

    # bf16 path exercises the packed-dtype (granule=16) sublane sizing.
    x3 = (jax.random.normal(jax.random.PRNGKey(2), (2, 8, 16, 16)) * 4.0).astype(jnp.bfloat16)
    y3 = hardswish(x3)
    jax.block_until_ready(y3)
    assert y3.shape == x3.shape and y3.dtype == x3.dtype
    assert jnp.allclose(y3.astype(jnp.float32),
                        hardswish_ref(x3.astype(jnp.float32)),
                        atol=3e-2, rtol=3e-2), "mismatch (bf16)"

    print("KERNEL_OK")
</pallas_src>

<mosaic_0001>
module attributes {stable_mosaic.version = 11 : i64} {
  func.func @_hardswish_kernel(%arg0: i32, %arg1: memref<1x2048xf32, #tpu.memory_space<vmem>>, %arg2: memref<1x2048xf32, #tpu.memory_space<vmem>>) attributes {dimension_semantics = [#tpu.dimension_semantics<parallel>], iteration_bounds = array<i64: 1>, scalar_prefetch = 0 : i64, scratch_operands = 0 : i64, tpu.core_type = #tpu.core_type<tc>, window_params = [{transform_indices = @transform_0, window_bounds = array<i64: 1, 2048>}, {transform_indices = @transform_1, window_bounds = array<i64: 1, 2048>}]} {
    %c0 = arith.constant 0 : index
    %c0_0 = arith.constant 0 : index
    %0 = vector.load %arg1[%c0, %c0_0] : memref<1x2048xf32, #tpu.memory_space<vmem>>, vector<1x2048xf32>
    %cst = arith.constant 3.000000e+00 : f32
    %1 = vector.broadcast %cst : f32 to vector<1x2048xf32>
    %2 = arith.addf %0, %1 : vector<1x2048xf32>
    %cst_1 = arith.constant 0.000000e+00 : f32
    %cst_2 = arith.constant 6.000000e+00 : f32
    %3 = vector.broadcast %cst_1 : f32 to vector<1x2048xf32>
    %4 = arith.maximumf %3, %2 : vector<1x2048xf32>
    %5 = vector.broadcast %cst_2 : f32 to vector<1x2048xf32>
    %6 = arith.minimumf %5, %4 : vector<1x2048xf32>
    %7 = arith.mulf %0, %6 : vector<1x2048xf32>
    %cst_3 = arith.constant 6.000000e+00 : f32
    %8 = vector.broadcast %cst_3 : f32 to vector<1x2048xf32>
    %9 = arith.divf %7, %8 : vector<1x2048xf32>
    %c0_4 = arith.constant 0 : index
    %c0_5 = arith.constant 0 : index
    %10 = vector.load %arg2[%c0_4, %c0_5] : memref<1x2048xf32, #tpu.memory_space<vmem>>, vector<1x2048xf32>
    tpu.vector_store %arg2[%c0_4, %c0_5], %9 {strides = array<i32>} : memref<1x2048xf32, #tpu.memory_space<vmem>>, vector<1x2048xf32>,
    return
  }
  func.func @transform_0(%arg0: i32) -> (i32, i32) {
    %c0_i32 = arith.constant 0 : i32
    %c0_i32_0 = arith.constant 0 : i32
    return %arg0, %c0_i32 : i32, i32
  }
  func.func @transform_1(%arg0: i32) -> (i32, i32) {
    %c0_i32 = arith.constant 0 : i32
    %c0_i32_0 = arith.constant 0 : i32
    return %arg0, %c0_i32 : i32, i32
  }
}

</mosaic_0001>

<llo_original>
// kernel: tpu_custom_call.1
$region0: #{tpu_custom_call.1}
  #allocation0 [shape = 'u32[]', space=smem, size = 0x4, offset = 0x4, fixed_abs, tag = 'smem constant byte address 0x4 - core index']
  #allocation1 [shape = 'u32[72,128]{1,0:T(1,128)}', space=vmem, size = 0x9000, scoped, tag = 'internal scratch']
  %s0 = inlined_call_operand.hbm [shape: f32[1,2048], index: 0, kind: input, shape index: {}]
  %s1 = inlined_call_operand.hbm [shape: f32[1,2048], index: 1, kind: output, shape index: {}]
  %s2 = sld [smem:[#allocation0]]
  $region18: #{tpu_custom_call.1} parent=0
    _
  %s4 = ssub.s32 1, %s2
  %s5 = scalar_select 0, %s4, %s2
  $region1: #{tpu_custom_call.1} parent=0
    #allocation2 [shape = 'u8[8192]{0}', space=vmem, size = 0x2000, scoped, tag = 'input window, operand 0, single buffered']
    #allocation3 [shape = 's32[1]{0}', space=sflag, size = 0x4, scoped, tag = 'scoped memory for tpu_custom_call.1']
    #allocation4 [shape = 's32[1]{0}', space=sflag, size = 0x4, scoped, tag = 'scoped memory for tpu_custom_call.1']
    #allocation5 [shape = 'u8[8192]{0}', space=vmem, size = 0x2000, scoped, tag = 'output window, operand 0, single buffered']
    %6 = vsyncpa [#allocation3], 0
    %7 = vsyncpa [#allocation4], 0
    // Predicated region
    $region2: #{tpu_custom_call.1} parent=1 // pred_check
      _
    $region3: #{tpu_custom_call.1} parent=1 // pred_check_branch
      %9 = sbr.rel (0) target = $region5
    $region4: #{tpu_custom_call.1} parent=1 // pred_region
      %11 = vsyncadd [#allocation3], 0
      %s13 = sshll.u32 %s0, 4
      %s14 = int_to_ptr.hbm [resolvable:$true] %s13
      %s15 = sshll.u32 [#allocation2], 4
      %s16 = int_to_ptr.vmem [resolvable:$true] %s15
      %18 = dma.hbm_to_vmem [thread:$0]  %s14, 256, %s16, [#allocation3]
    $region5: #{tpu_custom_call.1} parent=1 // pred_fallthru
      _
    // Predicated region
    $region6: #{tpu_custom_call.1} parent=1 // pred_check
      _
    $region7: #{tpu_custom_call.1} parent=1 // pred_check_branch
      %20 = sbr.rel (0) target = $region9
    $region8: #{tpu_custom_call.1} parent=1 // pred_region
      %22 = dma.done [#allocation3], 256
    $region9: #{tpu_custom_call.1} parent=1 // pred_fallthru
      _
    %v23 = vld [vmem:[#allocation2] sm:$0xff]
    %v24 = vld [vmem:[#allocation2 + $0x8] sm:$0xff]
    %v25 = vadd.f32 %v23, 3.0
    %v26 = vadd.f32 %v24, 3.0
    %v27 = vmax.f32 %v25, 0.0
    %v28 = vmax.f32 %v26, 0.0
    %v29 = vmin.f32 %v27, 6.0
    %v30 = vmin.f32 %v28, 6.0
    %v31 = vmul.f32 %v23, %v29
    %v32 = vmul.f32 %v24, %v30
    %v33 = vrcp.pop 6.0
    %v34 = vmul.f32 6.0, %v33
    %v35 = vsub.f32 1.0, %v34
    %v36 = vmul.f32 %v33, %v35
    %v37 = vadd.f32 %v33, %v36
    %vm38 = vweird.f32 %v33
    %v39 = vsel %vm38, %v33, %v37
    %v40 = vmul.f32 %v31, %v39
    %v41 = vmul.f32 %v32, %v39
    %42 = vst [vmem:[#allocation5] sm:$0xff] %v40
    %43 = vst [vmem:[#allocation5 + $0x8] sm:$0xff] %v41
    // Predicated region
    $region10: #{tpu_custom_call.1} parent=1 // pred_check
      _
    $region11: #{tpu_custom_call.1} parent=1 // pred_check_branch
      %45 = sbr.rel (0) target = $region13
    $region12: #{tpu_custom_call.1} parent=1 // pred_region
      %47 = vsyncadd [#allocation4], 0
      %s49 = sshll.u32 [#allocation5], 4
      %s50 = int_to_ptr.vmem [resolvable:$true] %s49
      %s51 = sshll.u32 %s1, 4
      %s52 = int_to_ptr.hbm [resolvable:$true] %s51
      %54 = dma.vmem_to_hbm [thread:$0]  %s50, 256, %s52, [#allocation4]
    $region13: #{tpu_custom_call.1} parent=1 // pred_fallthru
      _
    // Predicated region
    $region14: #{tpu_custom_call.1} parent=1 // pred_check
      _
    $region15: #{tpu_custom_call.1} parent=1 // pred_check_branch
      %56 = sbr.rel (0) target = $region17
    $region16: #{tpu_custom_call.1} parent=1 // pred_region
      %58 = dma.done [#allocation4], 256
    $region17: #{tpu_custom_call.1} parent=1 // pred_fallthru
      _
    %59 = vsyncpa [#allocation3], 1
    %60 = vsyncpa [#allocation4], 1

</llo_original>
